<compile_context>
chip_gen: v6e
topology: v6e:2x2x1
jax: 0.10.0
libtpu: 0.0.40
codegen_flags: <defaults>
</compile_context>

<pallas_src>
import jax
import jax.numpy as jnp
from jax.experimental import pallas as pl
from jax.experimental.pallas import tpu as pltpu


# ----------------------------------------------------------------------------
# Pallas kernels: (M,K) @ (K,N) + bias with f32 accumulation.
#   _matmul_bias_kernel_single : K untiled fast path (no scratch, no pl.when)
#   _matmul_bias_kernel_acc    : K tiled, bias-initialized f32 VMEM accumulator
# ----------------------------------------------------------------------------
def _matmul_bias_kernel_single(a_ref, w_ref, b_ref, o_ref):
    o_ref[...] = (jnp.dot(a_ref[...], w_ref[...],
                          preferred_element_type=jnp.float32)
                  + b_ref[...]).astype(o_ref.dtype)


def _matmul_bias_kernel_acc(a_ref, w_ref, b_ref, o_ref, acc_ref):
    @pl.when(pl.program_id(1) == 0)
    def _():
        # Bias-initialized accumulator: drops the epilogue broadcast-add.
        acc_ref[...] = jnp.broadcast_to(b_ref[...], acc_ref.shape)

    acc_ref[...] += jnp.dot(a_ref[...], w_ref[...],
                            preferred_element_type=jnp.float32)

    @pl.when(pl.program_id(1) == pl.num_programs(1) - 1)
    def _():
        o_ref[...] = acc_ref[...].astype(o_ref.dtype)


def _pick_divisor(n, candidates):
    """Largest candidate that divides n (and is <= n); else n itself."""
    for c in candidates:
        if c <= n and n % c == 0:
            return c
    return n


def _pick_m_tile(M):
    # v7x has two TensorCores: give the leading "parallel" axis >= 2 steps when
    # the problem is big enough to keep both MXUs fed (>=256 rows/tile, the
    # v6e/v7x MXU height). Below that, one whole-M tile minimizes the ~0.35 us
    # per-grid-step overhead; v5e's 4x128^2 MXU is fine either way.
    if M >= 1024:
        return 512
    if M >= 512:
        return 256
    return M


def conv_as_matmul(a, w, bias, out_dtype=jnp.bfloat16):
    """a: (M, K) bf16 patches, w: (K, N) bf16, bias: (N,) f32 -> (M, N) out_dtype."""
    M, K = a.shape
    K2, N = w.shape
    assert K == K2
    out_itemsize = jnp.dtype(out_dtype).itemsize
    bias2d = bias.reshape(1, N).astype(jnp.float32)

    m_tile = _pick_m_tile(M)
    grid_m = pl.cdiv(M, m_tile)   # partial last M tile: garbage rows only land
                                  # in masked-off output rows (K is never padded
                                  # on this path), so correctness holds.

    # Whole-K path when the (double-buffered) weight + tiles fit ~12 MiB VMEM:
    # stays under v5e's 16 MiB scoped default and well under v6e/v7x's 32 MiB.
    whole_k_vmem = (2 * m_tile * K * 2          # A tile, bf16, double-buffered
                    + 2 * K * N * 2             # weight, bf16 (index constant)
                    + 2 * m_tile * N * out_itemsize
                    + 2 * N * 4)                # bias
    if whole_k_vmem <= 12 * 1024 * 1024:
        return pl.pallas_call(
            _matmul_bias_kernel_single,
            out_shape=jax.ShapeDtypeStruct((M, N), out_dtype),
            grid_spec=pltpu.PrefetchScalarGridSpec(
                num_scalar_prefetch=0,
                grid=(grid_m,),
                in_specs=[pl.BlockSpec((m_tile, K), lambda m: (m, 0)),
                          pl.BlockSpec((K, N), lambda m: (0, 0)),   # resident
                          pl.BlockSpec((1, N), lambda m: (0, 0))],
                out_specs=pl.BlockSpec((m_tile, N), lambda m: (m, 0))),
            compiler_params=pltpu.CompilerParams(
                dimension_semantics=("parallel",)),
        )(a, w, bias2d)

    # ------------------------------------------------------------------
    # K-tiled fallback (real [512,1024,2048] channel counts, huge K*N).
    # TODO(synk): at N=2048 on v7x (64 MiB physical / 32 MiB scoped) an N tile
    # (e.g. 512) should be added as well; not needed for this configuration.
    # ------------------------------------------------------------------
    tk = _pick_divisor(K, (2048, 1024, 512, 256, 128))
    if tk == K and K > 2048:
        # No clean divisor: zero-pad K (exact for the matmul) instead of one
        # oversized block that could blow the VMEM budget.
        tk = 512
        kp = -(-K // tk) * tk
        a = jnp.pad(a, ((0, 0), (0, kp - K)))
        w = jnp.pad(w, ((0, kp - K), (0, 0)))
        K = kp
    nk = K // tk

    return pl.pallas_call(
        _matmul_bias_kernel_acc,
        out_shape=jax.ShapeDtypeStruct((M, N), out_dtype),
        grid_spec=pltpu.PrefetchScalarGridSpec(
            num_scalar_prefetch=0,
            grid=(grid_m, nk),                 # M parallel first, K reduction last
            in_specs=[pl.BlockSpec((m_tile, tk), lambda m, k: (m, k)),
                      # deeper buffering on the weight stream (v5e: HBM-bound)
                      pl.BlockSpec((tk, N), lambda m, k: (k, 0),
                                   pipeline_mode=pl.Buffered(3)),
                      pl.BlockSpec((1, N), lambda m, k: (0, 0))],
            out_specs=pl.BlockSpec((m_tile, N), lambda m, k: (m, 0)),
            scratch_shapes=[pltpu.VMEM((m_tile, N), jnp.float32)]),
        compiler_params=pltpu.CompilerParams(
            dimension_semantics=("parallel", "arbitrary")),
    )(a, w, bias2d)


# ----------------------------------------------------------------------------
# Exact F.interpolate(mode='nearest') on a bool mask (wrapper glue, not a
# kernel: a strided slice / tiny gather is free, a Pallas kernel here is
# per-grid-step-overhead bound).
# ----------------------------------------------------------------------------
def nearest_downsample_mask(mask, ho, wo):
    B, H, W = mask.shape
    if H % ho == 0 and W % wo == 0:
        return mask[:, ::H // ho, ::W // wo]
    # PyTorch nearest: src = floor(dst * in / out) -> exact integer math.
    idx_h = (jnp.arange(ho) * H) // ho
    idx_w = (jnp.arange(wo) * W) // wo
    return mask[:, idx_h][:, :, idx_w]


# ----------------------------------------------------------------------------
# BackboneBase stand-in
# ----------------------------------------------------------------------------
class BackboneBasePallas:
    def __init__(self, in_channels, return_interm_layers, key):
        if return_interm_layers:
            self.strides = [8, 16, 32]
            # scaled-down stand-ins for [512, 1024, 2048]; kept as multiples of
            # 128 so the matmul output is lane-dense (unmasked stores, full MXU
            # output columns).
            self.num_channels = [128, 256, 512]
            self.names = ["0", "1", "2"]
        else:
            self.strides = [32]
            self.num_channels = [512]
            self.names = ["0"]
        self.in_channels = in_channels
        self.params = []
        for i, (s, c) in enumerate(zip(self.strides, self.num_channels)):
            kw, kb = jax.random.split(jax.random.fold_in(key, i))
            k = s * s * in_channels
            w = jax.random.normal(kw, (k, c), jnp.float32) / jnp.sqrt(float(k))
            b = 0.01 * jax.random.normal(kb, (c,), jnp.float32)
            self.params.append((w.astype(jnp.bfloat16), b))   # bf16 weights

    def __call__(self, tensors, mask):
        """tensors: (B, C, H, W) f32 NCHW; mask: (B, H, W) bool (True = pad)."""
        B, C, H, W = tensors.shape
        out = {}
        for name, s, c, (w, b) in zip(self.names, self.strides,
                                      self.num_channels, self.params):
            Ho, Wo = H // s, W // s
            # ONE fused XLA op per level: f32 NCHW -> bf16 im2col patch matrix
            # (cast + reshape + transpose fuse into a single copy; no standalone
            # NHWC intermediate and no per-level double transpose).
            # TODO(synk): a fully in-kernel patch gather (no materialized patch
            # matrix) needs a (B,Ho,s,Wo,s,C) BlockSpec plus an in-kernel
            # contraction over (s,s,C); with tiny C (=4 here) that reshape
            # crosses lane boundaries, so the fused-wrapper form is kept.
            a = (tensors.astype(jnp.bfloat16)
                 .reshape(B, C, Ho, s, Wo, s)
                 .transpose(0, 2, 4, 3, 5, 1)          # (B,Ho,Wo,s,s,C)
                 .reshape(B * Ho * Wo, s * s * C))
            feat = conv_as_matmul(a, w, b, out_dtype=jnp.bfloat16)   # Pallas (MXU)
            # Channels-last output: DETR flattens to (HW,B,C) downstream, so the
            # NCHW round trip (extra HBM read+write, lane-sparse layout) is dropped.
            feat = feat.reshape(B, Ho, Wo, c)
            # mask = F.interpolate(m[None].float(), size=x.shape[-2:]).bool()[0]
            m_ds = nearest_downsample_mask(mask, Ho, Wo)
            out[name] = (feat, m_ds)                                 # NestedTensor(x, mask)
        return out


if __name__ == "__main__":
    key = jax.random.PRNGKey(0)
    kx, kparam = jax.random.split(key)

    B, C, H, W = 2, 4, 64, 64
    x = jax.random.normal(kx, (B, C, H, W), jnp.float32)

    # DETR-style padding mask (True where padded)
    valid_h = jnp.array([64, 48])
    valid_w = jnp.array([64, 40])
    hh = jnp.arange(H)[None, :, None]
    ww = jnp.arange(W)[None, None, :]
    mask = (hh >= valid_h[:, None, None]) | (ww >= valid_w[:, None, None])

    model = BackboneBasePallas(in_channels=C, return_interm_layers=True, key=kparam)
    out = model(x, mask)

    # block + sanity checks against plain-JAX reference (same bf16 operands)
    for name, s, c, (w, b) in zip(model.names, model.strides,
                                  model.num_channels, model.params):
        feat, m_ds = out[name]
        feat = jax.block_until_ready(feat)
        m_ds = jax.block_until_ready(m_ds)
        Ho, Wo = H // s, W // s
        assert feat.shape == (B, Ho, Wo, c) and feat.dtype == jnp.bfloat16
        assert m_ds.shape == (B, Ho, Wo) and m_ds.dtype == jnp.bool_
        # mask reference: nearest downsample == strided slice when sizes divide
        assert bool(jnp.all(m_ds == mask[:, ::s, ::s]))
        # feature reference (same bf16 inputs, f32 math; bf16 output tolerance)
        a_ref = (x.astype(jnp.bfloat16)
                 .reshape(B, C, Ho, s, Wo, s)
                 .transpose(0, 2, 4, 3, 5, 1)
                 .reshape(B * Ho * Wo, s * s * C)
                 .astype(jnp.float32))
        f_ref = (a_ref @ w.astype(jnp.float32) + b).reshape(B, Ho, Wo, c)
        assert bool(jnp.allclose(feat.astype(jnp.float32), f_ref,
                                 rtol=2e-2, atol=2e-2))

    print("KERNEL_OK")
</pallas_src>

<mosaic_0001>
module attributes {stable_mosaic.version = 11 : i64} {
  func.func @_matmul_bias_kernel_single(%arg0: i32, %arg1: memref<128x256xbf16, #tpu.memory_space<vmem>>, %arg2: memref<256x128xbf16, #tpu.memory_space<vmem>>, %arg3: memref<1x128xf32, #tpu.memory_space<vmem>>, %arg4: memref<128x128xbf16, #tpu.memory_space<vmem>>) attributes {dimension_semantics = [#tpu.dimension_semantics<parallel>], iteration_bounds = array<i64: 1>, scalar_prefetch = 0 : i64, scratch_operands = 0 : i64, tpu.core_type = #tpu.core_type<tc>, window_params = [{transform_indices = @transform_0, window_bounds = array<i64: 128, 256>}, {pipeline_mode = #tpu.pipeline_mode<synchronous>, transform_indices = @transform_1, window_bounds = array<i64: 256, 128>}, {pipeline_mode = #tpu.pipeline_mode<synchronous>, transform_indices = @transform_2, window_bounds = array<i64: 1, 128>}, {transform_indices = @transform_3, window_bounds = array<i64: 128, 128>}]} {
    %c0 = arith.constant 0 : index
    %c0_0 = arith.constant 0 : index
    %0 = vector.load %arg1[%c0, %c0_0] : memref<128x256xbf16, #tpu.memory_space<vmem>>, vector<128x256xbf16>
    %c0_1 = arith.constant 0 : index
    %c0_2 = arith.constant 0 : index
    %1 = vector.load %arg2[%c0_1, %c0_2] : memref<256x128xbf16, #tpu.memory_space<vmem>>, vector<256x128xbf16>
    %cst = arith.constant dense<0.000000e+00> : vector<128x128xf32>
    %2 = tpu.matmul %0, %1, %cst {dimension_numbers = #tpu.dot_dimension_numbers<[1], [0], [0], [1], [0, 0, 1, 1], [], []>} : vector<128x256xbf16>, vector<256x128xbf16>, vector<128x128xf32> -> vector<128x128xf32>
    %c0_3 = arith.constant 0 : index
    %c0_4 = arith.constant 0 : index
    %3 = vector.load %arg3[%c0_3, %c0_4] : memref<1x128xf32, #tpu.memory_space<vmem>>, vector<1x128xf32>
    %4 = vector.broadcast %3 : vector<1x128xf32> to vector<128x128xf32>
    %5 = arith.addf %2, %4 : vector<128x128xf32>
    %6 = arith.truncf %5 : vector<128x128xf32> to vector<128x128xbf16>
    %c0_5 = arith.constant 0 : index
    %c0_6 = arith.constant 0 : index
    %7 = vector.load %arg4[%c0_5, %c0_6] : memref<128x128xbf16, #tpu.memory_space<vmem>>, vector<128x128xbf16>
    tpu.vector_store %arg4[%c0_5, %c0_6], %6 {strides = array<i32>} : memref<128x128xbf16, #tpu.memory_space<vmem>>, vector<128x128xbf16>,
    return
  }
  func.func @transform_0(%arg0: i32) -> (i32, i32) {
    %c0_i32 = arith.constant 0 : i32
    %c0_i32_0 = arith.constant 0 : i32
    return %arg0, %c0_i32 : i32, i32
  }
  func.func @transform_1(%arg0: i32) -> (i32, i32) {
    %c0_i32 = arith.constant 0 : i32
    %c0_i32_0 = arith.constant 0 : i32
    %c0_i32_1 = arith.constant 0 : i32
    return %c0_i32, %c0_i32_0 : i32, i32
  }
  func.func @transform_2(%arg0: i32) -> (i32, i32) {
    %c0_i32 = arith.constant 0 : i32
    %c0_i32_0 = arith.constant 0 : i32
    %c0_i32_1 = arith.constant 0 : i32
    return %c0_i32, %c0_i32_0 : i32, i32
  }
  func.func @transform_3(%arg0: i32) -> (i32, i32) {
    %c0_i32 = arith.constant 0 : i32
    %c0_i32_0 = arith.constant 0 : i32
    return %arg0, %c0_i32 : i32, i32
  }
}

</mosaic_0001>

<llo_original>
// kernel: tpu_custom_call.1
$region0: #{tpu_custom_call.1}
  #allocation0 [shape = 'u32[]', space=smem, size = 0x4, offset = 0x4, fixed_abs, tag = 'smem constant byte address 0x4 - core index']
  #allocation1 [shape = 'u32[144,128]{1,0:T(1,128)}', space=vmem, size = 0x12000, scoped, tag = 'internal scratch']
  %s0 = inlined_call_operand.hbm [shape: bf16[128,256], index: 0, kind: input, shape index: {}]
  %s1 = inlined_call_operand.hbm [shape: bf16[256,128], index: 1, kind: input, shape index: {}]
  %s2 = inlined_call_operand.vmem [shape: f32[1,128], index: 2, kind: input, shape index: {}]
  %s3 = inlined_call_operand.hbm [shape: bf16[128,128], index: 3, kind: output, shape index: {}]
  %s4 = sld [smem:[#allocation0]]
  $region30: #{tpu_custom_call.1} parent=0
    _
  %s6 = ssub.s32 1, %s4
  %s7 = scalar_select 0, %s6, %s4
  $region1: #{tpu_custom_call.1} parent=0
    #allocation2 [shape = 'u8[65536]{0}', space=vmem, size = 0x10000, scoped, tag = 'input window, operand 0, single buffered']
    #allocation3 [shape = 's32[1]{0}', space=sflag, size = 0x4, scoped, tag = 'scoped memory for tpu_custom_call.1']
    #allocation4 [shape = 's32[1]{0}', space=sflag, size = 0x4, scoped, tag = 'scoped memory for tpu_custom_call.1']
    #allocation5 [shape = 'u8[65536]{0}', space=vmem, size = 0x10000, scoped, tag = 'input window, operand 1, single buffered']
    #allocation6 [shape = 's32[1]{0}', space=sflag, size = 0x4, scoped, tag = 'scoped memory for tpu_custom_call.1']
    #allocation7 [shape = 'u8[32768]{0}', space=vmem, size = 0x8000, scoped, tag = 'output window, operand 0, single buffered']
    %8 = vsyncpa [#allocation3], 0
    %9 = vsyncpa [#allocation6], 0
    %10 = vsyncpa [#allocation4], 0
    // Predicated region
    $region2: #{tpu_custom_call.1} parent=1 // pred_check
      _
    $region3: #{tpu_custom_call.1} parent=1 // pred_check_branch
      %12 = sbr.rel (0) target = $region5
    $region4: #{tpu_custom_call.1} parent=1 // pred_region
      %s14 = ssub.s32 2048, 2048
      %15 = vsyncadd [#allocation3], %s14
      %s16 = sshll.u32 [#allocation2], 4
      %s17 = int_to_ptr.vmem [resolvable:$true] %s16
      %22 = dma.hbm_to_vmem [thread:$0]  %s0, 2048, %s17, [#allocation3], 128, 128, 8
    $region5: #{tpu_custom_call.1} parent=1 // pred_fallthru
      _
    // Predicated region
    $region6: #{tpu_custom_call.1} parent=1 // pred_check
      _
    $region7: #{tpu_custom_call.1} parent=1 // pred_check_branch
      %24 = sbr.rel (0) target = $region9
    $region8: #{tpu_custom_call.1} parent=1 // pred_region
      %s26 = ssub.s32 2048, 2048
      %27 = vsyncadd [#allocation6], %s26
      %s28 = sshll.u32 [#allocation5], 4
      %s29 = int_to_ptr.vmem [resolvable:$true] %s28
      %34 = dma.hbm_to_vmem [thread:$0]  %s1, 2048, %s29, [#allocation6], 64, 64, 4
    $region9: #{tpu_custom_call.1} parent=1 // pred_fallthru
      _
    // Predicated region
    $region10: #{tpu_custom_call.1} parent=1 // pred_check
      _
    $region11: #{tpu_custom_call.1} parent=1 // pred_check_branch
      %36 = sbr.rel (0) target = $region13
    $region12: #{tpu_custom_call.1} parent=1 // pred_region
      _
    $region13: #{tpu_custom_call.1} parent=1 // pred_fallthru
      _
    // Predicated region
    $region14: #{tpu_custom_call.1} parent=1 // pred_check
      _
    $region15: #{tpu_custom_call.1} parent=1 // pred_check_branch
      %38 = sbr.rel (0) target = $region17
    $region16: #{tpu_custom_call.1} parent=1 // pred_region
      %39 = dma.done [#allocation3], 2048
    $region17: #{tpu_custom_call.1} parent=1 // pred_fallthru
      _
    // Predicated region
    $region18: #{tpu_custom_call.1} parent=1 // pred_check
      _
    $region19: #{tpu_custom_call.1} parent=1 // pred_check_branch
      %41 = sbr.rel (0) target = $region21
    $region20: #{tpu_custom_call.1} parent=1 // pred_region
      %42 = dma.done [#allocation6], 2048
    $region21: #{tpu_custom_call.1} parent=1 // pred_fallthru
      _
    %v44 = vld [vmem:[#allocation2] sm:$0xff]
    %v45 = vld [vmem:[#allocation2 + $0x8] sm:$0xff]
    %v46 = vld [vmem:[#allocation2 + $0x10] sm:$0xff]
    %v47 = vld [vmem:[#allocation2 + $0x18] sm:$0xff]
    %v48 = vld [vmem:[#allocation2 + $0x20] sm:$0xff]
    %v49 = vld [vmem:[#allocation2 + $0x28] sm:$0xff]
    %v50 = vld [vmem:[#allocation2 + $0x30] sm:$0xff]
    %v51 = vld [vmem:[#allocation2 + $0x38] sm:$0xff]
    %v52 = vld [vmem:[#allocation2 + $0x40] sm:$0xff]
    %v53 = vld [vmem:[#allocation2 + $0x48] sm:$0xff]
    %v54 = vld [vmem:[#allocation2 + $0x50] sm:$0xff]
    %v55 = vld [vmem:[#allocation2 + $0x58] sm:$0xff]
    %v56 = vld [vmem:[#allocation2 + $0x60] sm:$0xff]
    %v57 = vld [vmem:[#allocation2 + $0x68] sm:$0xff]
    %v58 = vld [vmem:[#allocation2 + $0x70] sm:$0xff]
    %v59 = vld [vmem:[#allocation2 + $0x78] sm:$0xff]
    %v60 = vld [vmem:[#allocation5] sm:$0xf]
    %v61 = vld [vmem:[#allocation5 + $0x4] sm:$0xf]
    %v62 = vld [vmem:[#allocation5 + $0x8] sm:$0xf]
    %v63 = vld [vmem:[#allocation5 + $0xc] sm:$0xf]
    %v64 = vld [vmem:[#allocation5 + $0x10] sm:$0xf]
    %v65 = vld [vmem:[#allocation5 + $0x14] sm:$0xf]
    %v66 = vld [vmem:[#allocation5 + $0x18] sm:$0xf]
    %v67 = vld [vmem:[#allocation5 + $0x1c] sm:$0xf]
    %v68 = vld [vmem:[#allocation5 + $0x20] sm:$0xf]
    %v69 = vld [vmem:[#allocation5 + $0x24] sm:$0xf]
    %v70 = vld [vmem:[#allocation5 + $0x28] sm:$0xf]
    %v71 = vld [vmem:[#allocation5 + $0x2c] sm:$0xf]
    %v72 = vld [vmem:[#allocation5 + $0x30] sm:$0xf]
    %v73 = vld [vmem:[#allocation5 + $0x34] sm:$0xf]
    %v74 = vld [vmem:[#allocation5 + $0x38] sm:$0xf]
    %v75 = vld [vmem:[#allocation5 + $0x3c] sm:$0xf]
    %v76 = vld [vmem:[#allocation5 + $0x40] sm:$0xf]
    %v77 = vld [vmem:[#allocation5 + $0x44] sm:$0xf]
    %v78 = vld [vmem:[#allocation5 + $0x48] sm:$0xf]
    %v79 = vld [vmem:[#allocation5 + $0x4c] sm:$0xf]
    %v80 = vld [vmem:[#allocation5 + $0x50] sm:$0xf]
    %v81 = vld [vmem:[#allocation5 + $0x54] sm:$0xf]
    %v82 = vld [vmem:[#allocation5 + $0x58] sm:$0xf]
    %v83 = vld [vmem:[#allocation5 + $0x5c] sm:$0xf]
    %v84 = vld [vmem:[#allocation5 + $0x60] sm:$0xf]
    %v85 = vld [vmem:[#allocation5 + $0x64] sm:$0xf]
    %v86 = vld [vmem:[#allocation5 + $0x68] sm:$0xf]
    %v87 = vld [vmem:[#allocation5 + $0x6c] sm:$0xf]
    %v88 = vld [vmem:[#allocation5 + $0x70] sm:$0xf]
    %v89 = vld [vmem:[#allocation5 + $0x74] sm:$0xf]
    %v90 = vld [vmem:[#allocation5 + $0x78] sm:$0xf]
    %v91 = vld [vmem:[#allocation5 + $0x7c] sm:$0xf]
    %v92 = vld [vmem:[%s2] sm:$0x1]
    %v94 = vlaneseq
    %v95 = vshrl.u32 %v94, 7
    %v96 = vsub.s32 0, %v95
    %v97 = vrot.slane %v92, %v96
    %v115 = vunpack.c.l.b16 %v44
    %v116 = vunpack.c.h.b16 %v44
    %v117 = vunpack.c.l.b16 %v45
    %v118 = vunpack.c.h.b16 %v45
    %v119 = vunpack.c.l.b16 %v46
    %v120 = vunpack.c.h.b16 %v46
    %v121 = vunpack.c.l.b16 %v47
    %v122 = vunpack.c.h.b16 %v47
    %v123 = vunpack.c.l.b16 %v48
    %v124 = vunpack.c.h.b16 %v48
    %v125 = vunpack.c.l.b16 %v49
    %v126 = vunpack.c.h.b16 %v49
    %v127 = vunpack.c.l.b16 %v50
    %v128 = vunpack.c.h.b16 %v50
    %v129 = vunpack.c.l.b16 %v51
    %v130 = vunpack.c.h.b16 %v51
    %v131 = vunpack.c.l.b16 %v52
    %v132 = vunpack.c.h.b16 %v52
    %v133 = vunpack.c.l.b16 %v53
    %v134 = vunpack.c.h.b16 %v53
    %v135 = vunpack.c.l.b16 %v54
    %v136 = vunpack.c.h.b16 %v54
    %v137 = vunpack.c.l.b16 %v55
    %v138 = vunpack.c.h.b16 %v55
    %v139 = vunpack.c.l.b16 %v56
    %v140 = vunpack.c.h.b16 %v56
    %v141 = vunpack.c.l.b16 %v57
    %v142 = vunpack.c.h.b16 %v57
    %v143 = vunpack.c.l.b16 %v58
    %v144 = vunpack.c.h.b16 %v58
    %v145 = vunpack.c.l.b16 %v59
    %v146 = vunpack.c.h.b16 %v59
    %v147 = vpack.c.b16 %v117, %v115
    %v148 = vpack.c.b16 %v118, %v116
    %v149 = vpack.c.b16 %v121, %v119
    %v150 = vpack.c.b16 %v122, %v120
    %v151 = vpack.c.b16 %v125, %v123
    %v152 = vpack.c.b16 %v126, %v124
    %v153 = vpack.c.b16 %v129, %v127
    %v154 = vpack.c.b16 %v130, %v128
    %v155 = vpack.c.b16 %v133, %v131
    %v156 = vpack.c.b16 %v134, %v132
    %v157 = vpack.c.b16 %v137, %v135
    %v158 = vpack.c.b16 %v138, %v136
    %v159 = vpack.c.b16 %v141, %v139
    %v160 = vpack.c.b16 %v142, %v140
    %v161 = vpack.c.b16 %v145, %v143
    %v162 = vpack.c.b16 %v146, %v144
    %v211 = vunpack.c.l.b16 %v60
    %v212 = vunpack.c.l.b16 %v61
    %v213 = vunpack.c.l.b16 %v62
    %v214 = vunpack.c.l.b16 %v63
    %v215 = vunpack.c.l.b16 %v64
    %v216 = vunpack.c.l.b16 %v65
    %v217 = vunpack.c.l.b16 %v66
    %v218 = vunpack.c.l.b16 %v67
    %v219 = vunpack.c.l.b16 %v68
    %v220 = vunpack.c.l.b16 %v69
    %v221 = vunpack.c.l.b16 %v70
    %v222 = vunpack.c.l.b16 %v71
    %v223 = vunpack.c.l.b16 %v72
    %v224 = vunpack.c.l.b16 %v73
    %v225 = vunpack.c.l.b16 %v74
    %v226 = vunpack.c.l.b16 %v75
    %v227 = vunpack.c.l.b16 %v76
    %v228 = vunpack.c.l.b16 %v77
    %v229 = vunpack.c.l.b16 %v78
    %v230 = vunpack.c.l.b16 %v79
    %v231 = vunpack.c.l.b16 %v80
    %v232 = vunpack.c.l.b16 %v81
    %v233 = vunpack.c.l.b16 %v82
    %v234 = vunpack.c.l.b16 %v83
    %v235 = vunpack.c.l.b16 %v84
    %v236 = vunpack.c.l.b16 %v85
    %v237 = vunpack.c.l.b16 %v86
    %v238 = vunpack.c.l.b16 %v87
    %v239 = vunpack.c.l.b16 %v88
    %v240 = vunpack.c.l.b16 %v89
    %v241 = vunpack.c.l.b16 %v90
    %v242 = vunpack.c.l.b16 %v91
    %v243 = vpack.c.b16 %v212, %v211
    %v244 = vpack.c.b16 %v214, %v213
    %v245 = vpack.c.b16 %v216, %v215
    %v246 = vpack.c.b16 %v218, %v217
    %v247 = vpack.c.b16 %v220, %v219
    %v248 = vpack.c.b16 %v222, %v221
    %v249 = vpack.c.b16 %v224, %v223
    %v250 = vpack.c.b16 %v226, %v225
    %v251 = vpack.c.b16 %v228, %v227
    %v252 = vpack.c.b16 %v230, %v229
    %v253 = vpack.c.b16 %v232, %v231
    %v254 = vpack.c.b16 %v234, %v233
    %v255 = vpack.c.b16 %v236, %v235
    %v256 = vpack.c.b16 %v238, %v237
    %v257 = vpack.c.b16 %v240, %v239
    %v258 = vpack.c.b16 %v242, %v241
    %275 = vmatprep.subr.bf16.mxu0 0
    %276 = vmatpush1.bf16.msra.mxu0 %v250
    %277 = vmatprep.subr.bf16.mxu0 0
    %278 = vmatpush1.bf16.msra.mxu0 %v249
    %279 = vmatprep.subr.bf16.mxu0 0
    %280 = vmatpush1.bf16.msra.mxu0 %v248
    %281 = vmatprep.subr.bf16.mxu0 0
    %282 = vmatpush1.bf16.msra.mxu0 %v247
    %283 = vmatprep.subr.bf16.mxu0 0
    %284 = vmatpush1.bf16.msra.mxu0 %v246
    %285 = vmatprep.subr.bf16.mxu0 0
    %286 = vmatpush1.bf16.msra.mxu0 %v245
    %287 = vmatprep.subr.bf16.mxu0 0
    %288 = vmatpush1.bf16.msra.mxu0 %v244
    %289 = vmatprep.subr.bf16.mxu0 0
    %290 = vmatpush1.bf16.msra.mxu0 %v243
    %291 = vmatprep.subr.bf16.mxu0 0
    %292 = vmatpush2.bf16.msra.mxu0 %v258
    %293 = vmatprep.subr.bf16.mxu0 0
    %294 = vmatpush2.bf16.msra.mxu0 %v257
    %295 = vmatprep.subr.bf16.mxu0 0
    %296 = vmatpush2.bf16.msra.mxu0 %v256
    %297 = vmatprep.subr.bf16.mxu0 0
    %298 = vmatpush2.bf16.msra.mxu0 %v255
    %299 = vmatprep.subr.bf16.mxu0 0
    %300 = vmatpush2.bf16.msra.mxu0 %v254
    %301 = vmatprep.subr.bf16.mxu0 0
    %302 = vmatpush2.bf16.msra.mxu0 %v253
    %303 = vmatprep.subr.bf16.mxu0 0
    %304 = vmatpush2.bf16.msra.mxu0 %v252
    %305 = vmatprep.subr.bf16.mxu0 0
    %306 = vmatpush2.bf16.msra.mxu0 %v251
    %307 = vmatprep.mubr.bf16.mxu0 %v148
    %308 = vmatmul.mubr.bf16.gmra.mxu0 %v147
    %v309 = vpop.f32.mrf.mxu0
    %v310 = vadd.f32 %v97, %v309
    %v311 = vpop.f32.mrf.mxu0
    %v312 = vpop.f32.mrf.mxu0
    %v313 = vadd.f32 %v97, %v312
    %v314 = vpop.f32.mrf.mxu0
    %315 = vmatprep.mubr.bf16.mxu0 %v150
    %316 = vmatmul.mubr.bf16.gmra.mxu0 %v149
    %v317 = vpop.f32.mrf.mxu0
    %v318 = vadd.f32 %v97, %v317
    %v319 = vpop.f32.mrf.mxu0
    %v320 = vpop.f32.mrf.mxu0
    %v321 = vadd.f32 %v97, %v320
    %v322 = vpop.f32.mrf.mxu0
    %323 = vmatprep.mubr.bf16.mxu0 %v152
    %324 = vmatmul.mubr.bf16.gmra.mxu0 %v151
    %v325 = vpop.f32.mrf.mxu0
    %v326 = vadd.f32 %v97, %v325
    %v327 = vpop.f32.mrf.mxu0
    %v328 = vpop.f32.mrf.mxu0
    %v329 = vadd.f32 %v97, %v328
    %v330 = vpop.f32.mrf.mxu0
    %331 = vmatprep.mubr.bf16.mxu0 %v154
    %332 = vmatmul.mubr.bf16.gmra.mxu0 %v153
    %v333 = vpop.f32.mrf.mxu0
    %v334 = vadd.f32 %v97, %v333
    %v335 = vpop.f32.mrf.mxu0
    %v336 = vpop.f32.mrf.mxu0
    %v337 = vadd.f32 %v97, %v336
    %v338 = vpop.f32.mrf.mxu0
    %339 = vmatprep.mubr.bf16.mxu0 %v156
    %340 = vmatmul.mubr.bf16.gmra.mxu0 %v155
    %v341 = vpop.f32.mrf.mxu0
    %v342 = vadd.f32 %v97, %v341
    %v343 = vpop.f32.mrf.mxu0
    %v344 = vpop.f32.mrf.mxu0
    %v345 = vadd.f32 %v97, %v344
    %v346 = vpop.f32.mrf.mxu0
    %347 = vmatprep.mubr.bf16.mxu0 %v158
    %348 = vmatmul.mubr.bf16.gmra.mxu0 %v157
    %v349 = vpop.f32.mrf.mxu0
    %v350 = vadd.f32 %v97, %v349
    %v351 = vpop.f32.mrf.mxu0
    %v352 = vpop.f32.mrf.mxu0
    %v353 = vadd.f32 %v97, %v352
    %v354 = vpop.f32.mrf.mxu0
    %355 = vmatprep.mubr.bf16.mxu0 %v160
    %356 = vmatmul.mubr.bf16.gmra.mxu0 %v159
    %v357 = vpop.f32.mrf.mxu0
    %v358 = vadd.f32 %v97, %v357
    %v359 = vpop.f32.mrf.mxu0
    %v360 = vpop.f32.mrf.mxu0
    %v361 = vadd.f32 %v97, %v360
    %v362 = vpop.f32.mrf.mxu0
    %363 = vmatprep.mubr.bf16.mxu0 %v162
    %364 = vmatmul.mubr.bf16.gmra.mxu0 %v161
    %v365 = vpop.f32.mrf.mxu0
    %v366 = vadd.f32 %v97, %v365
    %v367 = vpop.f32.mrf.mxu0
    %v368 = vpop.f32.mrf.mxu0
    %v369 = vadd.f32 %v97, %v368
    %v370 = vpop.f32.mrf.mxu0
    %371 = vdwg.mxu0
    %v372 = vpack.c.bf16 %v313, %v310
    %v373 = vpack.c.bf16 %v321, %v318
    %v374 = vpack.c.bf16 %v329, %v326
    %v375 = vpack.c.bf16 %v337, %v334
    %v376 = vpack.c.bf16 %v345, %v342
    %v377 = vpack.c.bf16 %v353, %v350
    %v378 = vpack.c.bf16 %v361, %v358
    %v379 = vpack.c.bf16 %v369, %v366
    %v388 = vunpack.c.l.b16 %v372
    %v389 = vunpack.c.h.b16 %v372
    %v390 = vunpack.c.l.b16 %v373
    %v391 = vunpack.c.h.b16 %v373
    %v392 = vunpack.c.l.b16 %v374
    %v393 = vunpack.c.h.b16 %v374
    %v394 = vunpack.c.l.b16 %v375
    %v395 = vunpack.c.h.b16 %v375
    %v396 = vunpack.c.l.b16 %v376
    %v397 = vunpack.c.h.b16 %v376
    %v398 = vunpack.c.l.b16 %v377
    %v399 = vunpack.c.h.b16 %v377
    %v400 = vunpack.c.l.b16 %v378
    %v401 = vunpack.c.h.b16 %v378
    %v402 = vunpack.c.l.b16 %v379
    %v403 = vunpack.c.h.b16 %v379
    %v404 = vpack.c.b16 %v388, %v388
    %v405 = vpack.c.b16 %v389, %v389
    %v406 = vpack.c.b16 %v390, %v390
    %v407 = vpack.c.b16 %v391, %v391
    %v408 = vpack.c.b16 %v392, %v392
    %v409 = vpack.c.b16 %v393, %v393
    %v410 = vpack.c.b16 %v394, %v394
    %v411 = vpack.c.b16 %v395, %v395
    %v412 = vpack.c.b16 %v396, %v396
    %v413 = vpack.c.b16 %v397, %v397
    %v414 = vpack.c.b16 %v398, %v398
    %v415 = vpack.c.b16 %v399, %v399
    %v416 = vpack.c.b16 %v400, %v400
    %v417 = vpack.c.b16 %v401, %v401
    %v418 = vpack.c.b16 %v402, %v402
    %v419 = vpack.c.b16 %v403, %v403
    %436 = vst [vmem:[#allocation7] sm:$0xf] %v404
    %437 = vst [vmem:[#allocation7 + $0x4] sm:$0xf] %v405
    %438 = vst [vmem:[#allocation7 + $0x8] sm:$0xf] %v406
    %439 = vst [vmem:[#allocation7 + $0xc] sm:$0xf] %v407
    %440 = vst [vmem:[#allocation7 + $0x10] sm:$0xf] %v408
    %441 = vst [vmem:[#allocation7 + $0x14] sm:$0xf] %v409
    %442 = vst [vmem:[#allocation7 + $0x18] sm:$0xf] %v410
    %443 = vst [vmem:[#allocation7 + $0x1c] sm:$0xf] %v411
    %444 = vst [vmem:[#allocation7 + $0x20] sm:$0xf] %v412
    %445 = vst [vmem:[#allocation7 + $0x24] sm:$0xf] %v413
    %446 = vst [vmem:[#allocation7 + $0x28] sm:$0xf] %v414
    %447 = vst [vmem:[#allocation7 + $0x2c] sm:$0xf] %v415
    %448 = vst [vmem:[#allocation7 + $0x30] sm:$0xf] %v416
    %449 = vst [vmem:[#allocation7 + $0x34] sm:$0xf] %v417
    %450 = vst [vmem:[#allocation7 + $0x38] sm:$0xf] %v418
    %451 = vst [vmem:[#allocation7 + $0x3c] sm:$0xf] %v419
    // Predicated region
    $region22: #{tpu_custom_call.1} parent=1 // pred_check
      _
    $region23: #{tpu_custom_call.1} parent=1 // pred_check_branch
      %453 = sbr.rel (0) target = $region25
    $region24: #{tpu_custom_call.1} parent=1 // pred_region
      %s455 = ssub.s32 1024, 1024
      %456 = vsyncadd [#allocation4], %s455
      %s457 = sshll.u32 [#allocation7], 4
      %s458 = int_to_ptr.vmem [resolvable:$true] %s457
      %463 = dma.vmem_to_hbm [thread:$0]  %s458, 1024, %s3, [#allocation4], 64, 64, 4
    $region25: #{tpu_custom_call.1} parent=1 // pred_fallthru
      _
    // Predicated region
    $region26: #{tpu_custom_call.1} parent=1 // pred_check
      _
    $region27: #{tpu_custom_call.1} parent=1 // pred_check_branch
      %465 = sbr.rel (0) target = $region29
    $region28: #{tpu_custom_call.1} parent=1 // pred_region
      %466 = dma.done [#allocation4], 1024
    $region29: #{tpu_custom_call.1} parent=1 // pred_fallthru
      _
    %467 = vsyncpa [#allocation3], 1
    %468 = vsyncpa [#allocation6], 1
    %469 = vsyncpa [#allocation4], 1

</llo_original>
